<compile_context>
chip_gen: v5e
topology: v5e:2x2
jax: 0.10.0
libtpu: 0.0.40
codegen_flags: <defaults>
</compile_context>

<pallas_src>
import jax
import jax.numpy as jnp
from jax.experimental import pallas as pl
from jax.experimental.pallas import tpu as pltpu

_LANES = 128
_MAX_ROW_TILE = 2048          # 2048 x 128 f32 = 1 MiB per block.
_MIN_PALLAS_ELEMENTS = 32768  # below this, a fused jnp clamp wins.


def _sublane_pack(dtype):
    """Rows per vreg for this dtype (8 for 32-bit, 16 for 16-bit, 32 for 8-bit)."""
    return max(8, 32 // jnp.dtype(dtype).itemsize)


def _clip_boxes_kernel(hw_ref, x_ref, out_ref):
    # hw_ref: (2,) scalar-prefetch (SMEM): [width, height]
    # x_ref / out_ref: (row_tile, 128) lane-dense tile of the flattened boxes.
    x = x_ref[...]
    dtype = x.dtype

    # Coordinate index repeats every 4 lanes and is row-invariant (128 % 4 == 0),
    # so a single (1, 128) bound pattern broadcast over the tile suffices.
    lane = jax.lax.broadcasted_iota(jnp.int32, (1, x.shape[-1]), 1)
    col = lane % 4  # 0:x1, 1:y1, 2:x2, 3:y2

    if jnp.issubdtype(dtype, jnp.floating):
        # NOTE: for bf16/f16 boxes, W/H round to the box dtype (same as torch
        # clamping a low-precision tensor against a python int bound).
        w = hw_ref[0].astype(dtype)
        h = hw_ref[1].astype(dtype)
        lo_sent = jnp.array(-jnp.inf, dtype)
        hi_sent = jnp.array(jnp.inf, dtype)
    else:
        info = jnp.iinfo(dtype)
        # Clip in int32 first so narrow int dtypes cannot wrap.
        w = jnp.clip(hw_ref[0], info.min, info.max).astype(dtype)
        h = jnp.clip(hw_ref[1], info.min, info.max).astype(dtype)
        lo_sent = jnp.array(info.min, dtype)
        hi_sent = jnp.array(info.max, dtype)
    zero = jnp.array(0, dtype)

    lower = jnp.where(col < 2, zero, lo_sent)                        # (1, 128)
    upper = jnp.where(col == 2, w, jnp.where(col == 3, h, hi_sent))  # (1, 128)

    # Exactly 1 vld + max + min + 1 vst per vreg — purely HBM-bound.
    out_ref[...] = jnp.minimum(jnp.maximum(x, lower), upper)


def _clip_boxes_jnp(boxes, width, height):
    """Fused-XLA fallback (tiny inputs / element counts not divisible by 128)."""
    dtype = boxes.dtype
    if jnp.issubdtype(dtype, jnp.floating):
        lo, hi = -jnp.inf, jnp.inf
        w, h = float(width), float(height)
    else:
        info = jnp.iinfo(dtype)
        lo, hi = info.min, info.max
        w = min(max(int(width), info.min), info.max)
        h = min(max(int(height), info.min), info.max)
    lower = jnp.array([0, 0, lo, lo], dtype=dtype)
    upper = jnp.array([hi, hi, w, h], dtype=dtype)
    return jnp.minimum(jnp.maximum(boxes, lower), upper)


def clip_boxes(boxes, img, *, min_pallas_elements=_MIN_PALLAS_ELEMENTS):
    """Functional equivalent of ClipBoxes.forward(boxes, img)."""
    _, _, height, width = img.shape
    b, n, c = boxes.shape
    assert c == 4, "boxes last dim must be 4 (x1, y1, x2, y2)"
    dtype = boxes.dtype
    total = b * n * 4

    # Fast path: tiny problems, or totals where a lane-dense (rows, 128) view
    # would require a padding copy.  XLA fuses this clamp for free.
    if total < min_pallas_elements or total % _LANES != 0:
        return _clip_boxes_jnp(boxes, width, height)

    rows = total // _LANES
    pack = _sublane_pack(dtype)

    if rows >= 2 * _MAX_ROW_TILE:
        row_tile = _MAX_ROW_TILE                       # many big blocks
    elif rows >= 2 * pack:
        # Exactly 2 blocks so the parallel grid axis can span both v7x cores;
        # rounded to the dtype's sublane packing (last block is masked).
        row_tile = ((pl.cdiv(rows, 2) + pack - 1) // pack) * pack
    else:
        row_tile = rows                                # single full-extent block
    num_blocks = pl.cdiv(rows, row_tile)

    # Free bitcast view — no pad, no tail slice.
    x2d = boxes.reshape(rows, _LANES)

    # Width/height as runtime SMEM scalars (no shape-dependent recompiles).
    hw_dtype = jnp.float32 if jnp.issubdtype(dtype, jnp.floating) else jnp.int32
    hw = jnp.array([width, height], dtype=hw_dtype)

    itemsize = jnp.dtype(dtype).itemsize
    out2d = pl.pallas_call(
        _clip_boxes_kernel,
        out_shape=jax.ShapeDtypeStruct((rows, _LANES), dtype),
        grid_spec=pltpu.PrefetchScalarGridSpec(
            num_scalar_prefetch=1,
            grid=(num_blocks,),
            in_specs=[pl.BlockSpec((row_tile, _LANES), lambda i, hw: (i, 0))],
            out_specs=pl.BlockSpec((row_tile, _LANES), lambda i, hw: (i, 0)),
        ),
        compiler_params=pltpu.CompilerParams(
            dimension_semantics=("parallel",)),
        cost_estimate=pl.CostEstimate(
            flops=2 * total, transcendentals=0,
            bytes_accessed=2 * total * itemsize),
        # Semantically in-place: alias the lane-dense boxes view (arg index 1,
        # after the scalar-prefetch arg) to output 0.
        input_output_aliases={1: 0},
    )(hw, x2d)

    return out2d.reshape(b, n, 4)


def _reference(boxes, W, H):
    ref = boxes
    ref = ref.at[:, :, 0].set(jnp.maximum(ref[:, :, 0], 0.0))
    ref = ref.at[:, :, 1].set(jnp.maximum(ref[:, :, 1], 0.0))
    ref = ref.at[:, :, 2].set(jnp.minimum(ref[:, :, 2], float(W)))
    ref = ref.at[:, :, 3].set(jnp.minimum(ref[:, :, 3], float(H)))
    return ref


if __name__ == "__main__":
    key = jax.random.PRNGKey(0)
    k1, k2, k3, k_img = jax.random.split(key, 4)

    B = 2
    C, H, W = 4, 16, 16  # image: NCHW
    img = jax.random.normal(k_img, (B, C, H, W), dtype=jnp.float32)

    def make_boxes(k, n):
        return jax.random.uniform(k, (B, n, 4), dtype=jnp.float32,
                                  minval=-10.0, maxval=30.0)

    # 1) Tiny input -> fused-jnp fast path (no kernel launch overhead).
    boxes_small = make_boxes(k1, 8)
    out_small = jax.block_until_ready(clip_boxes(boxes_small, img))
    assert jnp.allclose(out_small, _reference(boxes_small, W, H)), \
        "ClipBoxes mismatch (fast path)"

    # 2) Pallas path: 2*4096*4 = 32768 elems -> 256 lane-dense rows, 2 full blocks.
    boxes_med = make_boxes(k2, 4096)
    out_med = jax.block_until_ready(clip_boxes(boxes_med, img))
    assert jnp.allclose(out_med, _reference(boxes_med, W, H)), \
        "ClipBoxes mismatch (Pallas, full blocks)"

    # 3) Pallas path with a partial (masked) last block: 2*4624*4 = 36992 elems
    #    -> 289 rows, tile 152 -> blocks of 152 and 137 rows.
    boxes_odd = make_boxes(k3, 4624)
    out_odd = jax.block_until_ready(clip_boxes(boxes_odd, img))
    assert jnp.allclose(out_odd, _reference(boxes_odd, W, H)), \
        "ClipBoxes mismatch (Pallas, partial last block)"

    print("KERNEL_OK")
</pallas_src>

<mosaic_0001>
module attributes {stable_mosaic.version = 11 : i64} {
  func.func @_clip_boxes_kernel(%arg0: i32, %arg1: memref<2xf32, #tpu.memory_space<smem>>, %arg2: memref<128x128xf32, #tpu.memory_space<vmem>>, %arg3: memref<128x128xf32, #tpu.memory_space<vmem>>) attributes {dimension_semantics = [#tpu.dimension_semantics<parallel>], iteration_bounds = array<i64: 2>, scalar_prefetch = 1 : i64, scratch_operands = 0 : i64, tpu.core_type = #tpu.core_type<tc>, window_params = [{transform_indices = @transform_0, window_bounds = array<i64: 128, 128>}, {transform_indices = @transform_1, window_bounds = array<i64: 128, 128>}]} {
    %c0 = arith.constant 0 : index
    %c0_0 = arith.constant 0 : index
    %0 = vector.load %arg2[%c0, %c0_0] : memref<128x128xf32, #tpu.memory_space<vmem>>, vector<128x128xf32>
    %1 = tpu.iota {dimensions = array<i32: 1>} : vector<1x128xi32>
    %c4_i32 = arith.constant 4 : i32
    %c0_i32 = arith.constant 0 : i32
    %2 = arith.cmpi eq, %c4_i32, %c0_i32 : i32
    %c1_i32 = arith.constant 1 : i32
    %3 = arith.select %2, %c1_i32, %c4_i32 : i32
    %4 = vector.broadcast %3 : i32 to vector<1x128xi32>
    %5 = arith.remsi %1, %4 : vector<1x128xi32>
    %c0_i32_1 = arith.constant 0 : i32
    %6 = vector.broadcast %c0_i32_1 : i32 to vector<1x128xi32>
    %7 = arith.cmpi ne, %5, %6 : vector<1x128xi32>
    %c0_i32_2 = arith.constant 0 : i32
    %8 = vector.broadcast %c0_i32_2 : i32 to vector<1x128xi32>
    %9 = arith.cmpi slt, %5, %8 : vector<1x128xi32>
    %c0_i32_3 = arith.constant 0 : i32
    %10 = arith.cmpi slt, %3, %c0_i32_3 : i32
    %11 = vector.broadcast %10 : i1 to vector<1x128xi1>
    %12 = vector.broadcast %11 : vector<1x128xi1> to vector<1x128xi1>
    %13 = arith.xori %9, %12 : vector<1x128xi1>
    %14 = arith.andi %13, %7 : vector<1x128xi1>
    %15 = vector.broadcast %3 : i32 to vector<1x128xi32>
    %16 = arith.addi %5, %15 : vector<1x128xi32>
    %17 = arith.select %14, %16, %5 : vector<1x128xi1>, vector<1x128xi32>
    %c0_4 = arith.constant 0 : index
    %18 = memref.load %arg1[%c0_4] : memref<2xf32, #tpu.memory_space<smem>>
    %c1 = arith.constant 1 : index
    %19 = memref.load %arg1[%c1] : memref<2xf32, #tpu.memory_space<smem>>
    %c2_i32 = arith.constant 2 : i32
    %20 = vector.broadcast %c2_i32 : i32 to vector<1x128xi32>
    %21 = arith.cmpi slt, %17, %20 : vector<1x128xi32>
    %cst = arith.constant 0.000000e+00 : f32
    %cst_5 = arith.constant 0xFF800000 : f32
    %22 = vector.broadcast %cst : f32 to vector<1x128xf32>
    %23 = vector.broadcast %cst_5 : f32 to vector<1x128xf32>
    %24 = arith.select %21, %22, %23 : vector<1x128xi1>, vector<1x128xf32>
    %c2_i32_6 = arith.constant 2 : i32
    %25 = vector.broadcast %c2_i32_6 : i32 to vector<1x128xi32>
    %26 = arith.cmpi eq, %17, %25 : vector<1x128xi32>
    %c3_i32 = arith.constant 3 : i32
    %27 = vector.broadcast %c3_i32 : i32 to vector<1x128xi32>
    %28 = arith.cmpi eq, %17, %27 : vector<1x128xi32>
    %cst_7 = arith.constant 0x7F800000 : f32
    %29 = vector.broadcast %19 : f32 to vector<1x128xf32>
    %30 = vector.broadcast %cst_7 : f32 to vector<1x128xf32>
    %31 = arith.select %28, %29, %30 : vector<1x128xi1>, vector<1x128xf32>
    %32 = vector.broadcast %18 : f32 to vector<1x128xf32>
    %33 = arith.select %26, %32, %31 : vector<1x128xi1>, vector<1x128xf32>
    %34 = vector.broadcast %24 : vector<1x128xf32> to vector<128x128xf32>
    %35 = arith.maximumf %0, %34 : vector<128x128xf32>
    %36 = vector.broadcast %33 : vector<1x128xf32> to vector<128x128xf32>
    %37 = arith.minimumf %35, %36 : vector<128x128xf32>
    %c0_8 = arith.constant 0 : index
    %c0_9 = arith.constant 0 : index
    %38 = vector.load %arg3[%c0_8, %c0_9] : memref<128x128xf32, #tpu.memory_space<vmem>>, vector<128x128xf32>
    tpu.vector_store %arg3[%c0_8, %c0_9], %37 {strides = array<i32>} : memref<128x128xf32, #tpu.memory_space<vmem>>, vector<128x128xf32>,
    return
  }
  func.func @transform_0(%arg0: i32, %arg1: memref<2xf32, #tpu.memory_space<smem>>) -> (i32, i32) {
    %c0_i32 = arith.constant 0 : i32
    %c0_i32_0 = arith.constant 0 : i32
    return %arg0, %c0_i32 : i32, i32
  }
  func.func @transform_1(%arg0: i32, %arg1: memref<2xf32, #tpu.memory_space<smem>>) -> (i32, i32) {
    %c0_i32 = arith.constant 0 : i32
    %c0_i32_0 = arith.constant 0 : i32
    return %arg0, %c0_i32 : i32, i32
  }
}

</mosaic_0001>

<llo_original>
// kernel: tpu_custom_call.1
$region0: #{tpu_custom_call.1}
  #allocation0 [shape = 'u32[]', space=smem, size = 0x4, offset = 0x4, fixed_abs, tag = 'smem constant byte address 0x4 - core index']
  #allocation1 [shape = 'u32[72,128]{1,0:T(1,128)}', space=vmem, size = 0x9000, scoped, tag = 'internal scratch']
  #allocation2 [shape = 's32[1]{0}', space=sflag, size = 0x4, scoped, tag = 'scoped memory for tpu_custom_call.1']
  #allocation3 [shape = 'u8[512]{0}', space=smem, size = 0x200, scoped, tag = 'prefetched SMEM operand 0']
  %s0 = inlined_call_operand.vmem [shape: f32[2], index: 0, kind: input, shape index: {}]
  %s1 = inlined_call_operand.hbm [shape: f32[256,128], index: 1, kind: input, shape index: {}, may-alias: {1,2}]
  %s2 = inlined_call_operand.hbm [shape: f32[256,128], index: 2, kind: output, shape index: {}, may-alias: {1,2}]
  %s3 = sld [smem:[#allocation0]]
  $region41: #{tpu_custom_call.1} parent=0
    _
  %s5 = ssub.s32 1, %s3
  %s6 = scalar_select 0, %s5, %s3
  %s8 = sshll.u32 %s0, 4
  %s9 = int_to_ptr.vmem [resolvable:$true] %s8
  %11 = dma.vmem_to_smem %s9, 16, [#allocation3], [#allocation2]
  %13 = dma.done [#allocation2], 16
  %14 = sfence
  $region1: #{tpu_custom_call.1} parent=0
    #allocation4 [shape = 'u8[131072]{0}', space=vmem, size = 0x20000, scoped, tag = 'input window, operand 1']
    #allocation5 [shape = 's32[2]{0}', space=sflag, size = 0x8, scoped, tag = 'scoped memory for tpu_custom_call.1']
    #allocation6 [shape = 's32[2]{0}', space=sflag, size = 0x8, scoped, tag = 'scoped memory for tpu_custom_call.1']
    #allocation7 [shape = 'u8[131072]{0}', space=vmem, size = 0x20000, scoped, tag = 'output window, operand 0']
    %15 = vsyncpa [#allocation5], 0
    %s16 = scalar_lea.sflag [#allocation5], 1
    %17 = vsyncpa %s16, 0
    %18 = vsyncpa [#allocation6], 0
    %s19 = scalar_lea.sflag [#allocation6], 1
    %20 = vsyncpa %s19, 0
    loop: start=0, step=1, limit=4
    $region2: #{tpu_custom_call.1} parent=1 // loop_pre_header
      _
    $region3: #{tpu_custom_call.1} parent=1 // loop_header
      %s22 = sphi 0, %s26
      %p23 = scmp.ge.s32.totalorder %s22, 4
      %s32 = sphi 0, %s34
      %s35 = sphi 0, %s32
      %s36 = sphi 0, %s35
      %s52 = sphi 0, %s36
      %s58 = sphi 0, %s60
      %s61 = sphi 0, %s58
      %s62 = sphi 0, %s61
      %s78 = sphi 0, %s62
    $region4: #{tpu_custom_call.1} parent=1 // loop_header_branch
      %25 = sbr.rel (%p23) target = $region8
    $region5: #{tpu_custom_call.1} parent=1 // loop_body
      %s27 = ssub.s32 %s22, 1
      %s28 = ssub.s32 %s22, 2
      %s29 = sadd.s32 %s22, 1
      %s30 = ssub.s32 %s22, %s29
      %p31 = scmp.eq.s32.totalorder %s30, 0
      %s33 = sadd.s32 %s32, 1
      %s34 = scalar_select %p31, %s32, %s33
      %p37 = pneg %p31
      %p38 = scmp.eq.s32.totalorder %s22, 1
      %p39 = por %p37, %p38
      %p40 = scmp.ne.s32.totalorder %s32, %s35
      %p41 = scmp.eq.s32.totalorder %s22, 0
      %p42 = por %p40, %p41
      %p43 = scmp.ne.s32.totalorder %s32, %s35
      %p44 = scmp.eq.s32.totalorder %s27, 1
      %p45 = por %p43, %p44
      %p46 = scmp.ne.s32.totalorder %s35, %s36
      %p47 = scmp.eq.s32.totalorder %s27, 0
      %p48 = por %p46, %p47
      %p49 = scmp.ne.s32.totalorder %s35, %s36
      %p50 = scmp.eq.s32.totalorder %s28, 1
      %p51 = por %p49, %p50
      %p53 = scmp.ne.s32.totalorder %s36, %s52
      %p54 = scmp.eq.s32.totalorder %s28, 0
      %p55 = por %p53, %p54
      %s56 = ssub.s32 %s22, %s29
      %p57 = scmp.eq.s32.totalorder %s56, 0
      %s59 = sadd.s32 %s58, 1
      %s60 = scalar_select %p57, %s58, %s59
      %p63 = pneg %p57
      %p64 = scmp.eq.s32.totalorder %s22, 1
      %p65 = por %p63, %p64
      %p66 = scmp.ne.s32.totalorder %s58, %s61
      %p67 = scmp.eq.s32.totalorder %s22, 0
      %p68 = por %p66, %p67
      %p69 = scmp.ne.s32.totalorder %s58, %s61
      %p70 = scmp.eq.s32.totalorder %s27, 1
      %p71 = por %p69, %p70
      %p72 = scmp.ne.s32.totalorder %s61, %s62
      %p73 = scmp.eq.s32.totalorder %s27, 0
      %p74 = por %p72, %p73
      %p75 = scmp.ne.s32.totalorder %s61, %s62
      %p76 = scmp.eq.s32.totalorder %s28, 1
      %p77 = por %p75, %p76
      %p79 = scmp.ne.s32.totalorder %s62, %s78
      %p80 = scmp.eq.s32.totalorder %s28, 0
      %p81 = por %p79, %p80
      %p82 = scmp.le.s32.totalorder 1, %s22
      %p83 = scmp.lt.s32.totalorder %s22, 3
      %p84 = pnand %p82, %p83
      %p85 = pneg %p84
      // Predicated region
      $region9: #{tpu_custom_call.1} parent=5 // pred_check
        _
      $region10: #{tpu_custom_call.1} parent=5 // pred_check_branch
        %87 = sbr.rel (%p84) target = $region12
      $region11: #{tpu_custom_call.1} parent=5 // pred_region
        %s88 = ssub.s32 %s22, 1
      $region12: #{tpu_custom_call.1} parent=5 // pred_fallthru
        _
      %p89 = scmp.lt.s32.totalorder %s22, 2
      // Predicated region
      $region13: #{tpu_custom_call.1} parent=5 // pred_check
        %p90 = pneg %p89
      $region14: #{tpu_custom_call.1} parent=5 // pred_check_branch
        %92 = sbr.rel (%p90) target = $region16
      $region15: #{tpu_custom_call.1} parent=5 // pred_region
        // Predicated region
        $region17: #{tpu_custom_call.1} parent=15 // pred_check
          %p93 = pneg %p42
        $region18: #{tpu_custom_call.1} parent=15 // pred_check_branch
          %95 = sbr.rel (%p93) target = $region20
        $region19: #{tpu_custom_call.1} parent=15 // pred_region
          %s96 = sand.u32 %s32, 1
          %s97 = scalar_lea.sflag [#allocation5], %s96
          %s98 = sand.u32 %s32, 1
          %s99 = smul.addr %s98, 128
          %s100 = scalar_lea.vmem [#allocation4], %s99
          %s101 = smul.u32 16, %s22
          %103 = vsyncadd %s97, 0
          %s104 = smul.addr %s101, 8
          %s105 = scalar_lea.hbm %s1, %s104
          %s106 = sshll.u32 %s105, 4
          %s107 = int_to_ptr.hbm [resolvable:$true] %s106
          %s108 = sshll.u32 %s100, 4
          %s109 = int_to_ptr.vmem [resolvable:$true] %s108
          %114 = dma.hbm_to_vmem [thread:$0]  %s107, 2048, %s109, %s97, 128, 128, 8
        $region20: #{tpu_custom_call.1} parent=15 // pred_fallthru
          _
      $region16: #{tpu_custom_call.1} parent=5 // pred_fallthru
        _
      %p115 = scmp.le.s32.totalorder 1, %s22
      %p116 = scmp.lt.s32.totalorder %s22, 3
      %p117 = pnand %p115, %p116
      %p118 = pneg %p117
      // Predicated region
      $region21: #{tpu_custom_call.1} parent=5 // pred_check
        _
      $region22: #{tpu_custom_call.1} parent=5 // pred_check_branch
        %120 = sbr.rel (%p117) target = $region24
      $region23: #{tpu_custom_call.1} parent=5 // pred_region
        %s121 = ssub.s32 %s22, 1
        %s122 = sand.u32 %s35, 1
        %s123 = scalar_lea.sflag [#allocation5], %s122
        %s124 = sand.u32 %s35, 1
        %s125 = smul.addr %s124, 128
        %s126 = scalar_lea.vmem [#allocation4], %s125
        // Predicated region
        $region25: #{tpu_custom_call.1} parent=23 // pred_check
          %p127 = pneg %p48
        $region26: #{tpu_custom_call.1} parent=23 // pred_check_branch
          %129 = sbr.rel (%p127) target = $region28
        $region27: #{tpu_custom_call.1} parent=23 // pred_region
          %131 = dma.done %s123, 2048
        $region28: #{tpu_custom_call.1} parent=23 // pred_fallthru
          _
        %s132 = sand.u32 %s35, 1
        %s133 = scalar_lea.sflag [#allocation5], %s132
        %s134 = sand.u32 %s35, 1
        %s135 = smul.addr %s134, 128
        %s136 = scalar_lea.vmem [#allocation4], %s135
        %p137 = pneg %p48
        %p138 = pneg %p45
        %p139 = pneg %p74
        %p140 = pneg %p71
        %s141 = sand.u32 %s61, 1
        %s142 = scalar_lea.sflag [#allocation6], %s141
        %s143 = sand.u32 %s61, 1
        %s144 = smul.addr %s143, 128
        %s145 = scalar_lea.vmem [#allocation7], %s144
        %s146 = smul.u32 16, %s27
        %s147 = smul.u32 16, %s27
        %v148 = vld [vmem:[%s126] sm:$0xff]
        %v149 = vld [vmem:[%s126 + $0x8] sm:$0xff]
        %v150 = vld [vmem:[%s126 + $0x10] sm:$0xff]
        %v151 = vld [vmem:[%s126 + $0x18] sm:$0xff]
        %v152 = vld [vmem:[%s126 + $0x20] sm:$0xff]
        %v153 = vld [vmem:[%s126 + $0x28] sm:$0xff]
        %v154 = vld [vmem:[%s126 + $0x30] sm:$0xff]
        %v155 = vld [vmem:[%s126 + $0x38] sm:$0xff]
        %v156 = vld [vmem:[%s126 + $0x40] sm:$0xff]
        %v157 = vld [vmem:[%s126 + $0x48] sm:$0xff]
        %v158 = vld [vmem:[%s126 + $0x50] sm:$0xff]
        %v159 = vld [vmem:[%s126 + $0x58] sm:$0xff]
        %v160 = vld [vmem:[%s126 + $0x60] sm:$0xff]
        %v161 = vld [vmem:[%s126 + $0x68] sm:$0xff]
        %v162 = vld [vmem:[%s126 + $0x70] sm:$0xff]
        %v163 = vld [vmem:[%s126 + $0x78] sm:$0xff]
        %v164 = vlaneseq
        %v165 = vand.u32 %v164, 127
        %vm166 = vcmp.lt.s32.totalorder %v165, 0
        %v167 = vsub.s32 0, %v165
        %v168 = vsel %vm166, %v167, %v165
        %v169 = vshrl.u32 %v168, 2
        %v170 = vand.u32 %v168, 3
        %v171 = vsub.s32 0, %v170
        %v172 = vsel %vm166, %v171, %v170
        %vm173 = vcmp.ne.s32.totalorder %v172, 0
        %vm174 = vcmp.lt.s32.totalorder %v172, 0
        %vm175 = vmand %vm174, %vm173
        %v176 = vadd.s32 %v172, 4
        %v177 = vsel %vm175, %v176, %v172
        %s178 = sld [smem:[#allocation3]]
        %s179 = sld [smem:[#allocation3 + $0x1]]
        %vm180 = vcmp.lt.s32.totalorder %v177, 2
        %v181 = vsel %vm180, 0.0, -inf
        %vm182 = vcmp.eq.s32.totalorder %v177, 2
        %vm183 = vcmp.eq.s32.totalorder %v177, 3
        %v184 = vstv %s179
        %v185 = vsel %vm183, %v184, inf
        %v186 = vstv %s178
        %v187 = vsel %vm182, %v186, %v185
        %v188 = vmax.f32 %v148, %v181
        %v189 = vmax.f32 %v149, %v181
        %v190 = vmax.f32 %v150, %v181
        %v191 = vmax.f32 %v151, %v181
        %v192 = vmax.f32 %v152, %v181
        %v193 = vmax.f32 %v153, %v181
        %v194 = vmax.f32 %v154, %v181
        %v195 = vmax.f32 %v155, %v181
        %v196 = vmax.f32 %v156, %v181
        %v197 = vmax.f32 %v157, %v181
        %v198 = vmax.f32 %v158, %v181
        %v199 = vmax.f32 %v159, %v181
        %v200 = vmax.f32 %v160, %v181
        %v201 = vmax.f32 %v161, %v181
        %v202 = vmax.f32 %v162, %v181
        %v203 = vmax.f32 %v163, %v181
        %v204 = vmin.f32 %v188, %v187
        %v205 = vmin.f32 %v189, %v187
        %v206 = vmin.f32 %v190, %v187
        %v207 = vmin.f32 %v191, %v187
        %v208 = vmin.f32 %v192, %v187
        %v209 = vmin.f32 %v193, %v187
        %v210 = vmin.f32 %v194, %v187
        %v211 = vmin.f32 %v195, %v187
        %v212 = vmin.f32 %v196, %v187
        %v213 = vmin.f32 %v197, %v187
        %v214 = vmin.f32 %v198, %v187
        %v215 = vmin.f32 %v199, %v187
        %v216 = vmin.f32 %v200, %v187
        %v217 = vmin.f32 %v201, %v187
        %v218 = vmin.f32 %v202, %v187
        %v219 = vmin.f32 %v203, %v187
        %220 = vst [vmem:[%s145] sm:$0xff] %v204
        %221 = vst [vmem:[%s145 + $0x8] sm:$0xff] %v205
        %222 = vst [vmem:[%s145 + $0x10] sm:$0xff] %v206
        %223 = vst [vmem:[%s145 + $0x18] sm:$0xff] %v207
        %224 = vst [vmem:[%s145 + $0x20] sm:$0xff] %v208
        %225 = vst [vmem:[%s145 + $0x28] sm:$0xff] %v209
        %226 = vst [vmem:[%s145 + $0x30] sm:$0xff] %v210
        %227 = vst [vmem:[%s145 + $0x38] sm:$0xff] %v211
        %228 = vst [vmem:[%s145 + $0x40] sm:$0xff] %v212
        %229 = vst [vmem:[%s145 + $0x48] sm:$0xff] %v213
        %230 = vst [vmem:[%s145 + $0x50] sm:$0xff] %v214
        %231 = vst [vmem:[%s145 + $0x58] sm:$0xff] %v215
        %232 = vst [vmem:[%s145 + $0x60] sm:$0xff] %v216
        %233 = vst [vmem:[%s145 + $0x68] sm:$0xff] %v217
        %234 = vst [vmem:[%s145 + $0x70] sm:$0xff] %v218
        %235 = vst [vmem:[%s145 + $0x78] sm:$0xff] %v219
        %s236 = sand.u32 %s61, 1
        %s237 = scalar_lea.sflag [#allocation6], %s236
        %s238 = sand.u32 %s61, 1
        %s239 = smul.addr %s238, 128
        %s240 = scalar_lea.vmem [#allocation7], %s239
        // Predicated region
        $region29: #{tpu_custom_call.1} parent=23 // pred_check
          %p241 = pneg %p71
        $region30: #{tpu_custom_call.1} parent=23 // pred_check_branch
          %243 = sbr.rel (%p241) target = $region32
        $region31: #{tpu_custom_call.1} parent=23 // pred_region
          %s244 = smul.u32 16, %s27
          %246 = vsyncadd %s237, 0
          %s247 = smul.addr %s244, 8
          %s248 = scalar_lea.hbm %s2, %s247
          %s249 = sshll.u32 %s240, 4
          %s250 = int_to_ptr.vmem [resolvable:$true] %s249
          %s251 = sshll.u32 %s248, 4
          %s252 = int_to_ptr.hbm [resolvable:$true] %s251
          %257 = dma.vmem_to_hbm [thread:$0]  %s250, 2048, %s252, %s237, 128, 128, 8
        $region32: #{tpu_custom_call.1} parent=23 // pred_fallthru
          _
      $region24: #{tpu_custom_call.1} parent=5 // pred_fallthru
        _
      %p258 = scmp.le.s32.totalorder 2, %s22
      // Predicated region
      $region33: #{tpu_custom_call.1} parent=5 // pred_check
        %p259 = pneg %p258
      $region34: #{tpu_custom_call.1} parent=5 // pred_check_branch
        %261 = sbr.rel (%p259) target = $region36
      $region35: #{tpu_custom_call.1} parent=5 // pred_region
        %s262 = ssub.s32 %s22, 2
        // Predicated region
        $region37: #{tpu_custom_call.1} parent=35 // pred_check
          %p263 = pneg %p77
        $region38: #{tpu_custom_call.1} parent=35 // pred_check_branch
          %265 = sbr.rel (%p263) target = $region40
        $region39: #{tpu_custom_call.1} parent=35 // pred_region
          %s266 = sand.u32 %s62, 1
          %s267 = scalar_lea.sflag [#allocation6], %s266
          %s268 = sand.u32 %s62, 1
          %s269 = smul.addr %s268, 128
          %s270 = scalar_lea.vmem [#allocation7], %s269
          %272 = dma.done %s267, 2048
        $region40: #{tpu_custom_call.1} parent=35 // pred_fallthru
          _
      $region36: #{tpu_custom_call.1} parent=5 // pred_fallthru
        _
    $region6: #{tpu_custom_call.1} parent=1 // loop_footer
      %s26 = sadd.s32 1, %s22
    $region7: #{tpu_custom_call.1} parent=1 // loop_footer_branch
      %21 = sbr.rel target = $region3
    $region8: #{tpu_custom_call.1} parent=1 // loop_exit
      _
    %273 = vsyncpa [#allocation5], 1
    %s274 = scalar_lea.sflag [#allocation5], 1
    %275 = vsyncpa %s274, 1
    %276 = vsyncpa [#allocation6], 1
    %s277 = scalar_lea.sflag [#allocation6], 1
    %278 = vsyncpa %s277, 1

</llo_original>
